<compile_context>
chip_gen: v5e
topology: v5e:2x2
jax: 0.10.0
libtpu: 0.0.40
codegen_flags: <defaults>
</compile_context>

<pallas_src>
import functools

import numpy as np
import jax
import jax.numpy as jnp
from jax.experimental import pallas as pl
from jax.experimental.pallas import tpu as pltpu


_HUGE_SEGMENT = 1024       # u*v above this -> pure-JAX fallback (see TODO above)
_FOLD_TARGET_LANES = 256   # fold small-D rows until row width is ~2 full vregs


def _round_up(x, m):
    return ((x + m - 1) // m) * m


def _all_trivial(segs):
    return all(u == 1 or v == 1 for u, v in segs)


# ----------------------------------------------------------------------------
# Hardware config (generation aware; conservative defaults if detection fails).
# ----------------------------------------------------------------------------
def _tpu_config():
    cfg = dict(vmem_bytes=64 << 20, num_cores=1,
               peak_bf16_flops=197e12, hbm_bw=0.82e12)   # conservative (v5e-ish perf, v7x-sized VMEM)
    kind = ""
    try:
        kind = jax.devices()[0].device_kind.lower()
    except Exception:
        pass
    if "v7" in kind:
        cfg.update(vmem_bytes=64 << 20, num_cores=2,
                   peak_bf16_flops=996e12, hbm_bw=3.2e12)
    elif "v6" in kind or "trillium" in kind:
        cfg.update(vmem_bytes=128 << 20, num_cores=1,
                   peak_bf16_flops=918e12, hbm_bw=1.3e12)
    elif "v5p" in kind or "v4" in kind:
        cfg.update(vmem_bytes=128 << 20, num_cores=2,
                   peak_bf16_flops=459e12, hbm_bw=1.2e12)
    elif "v5" in kind:
        cfg.update(vmem_bytes=128 << 20, num_cores=1,
                   peak_bf16_flops=197e12, hbm_bw=0.82e12)
    try:
        info_fn = getattr(pltpu, "get_tpu_info", None)
        if info_fn is not None:
            vb = getattr(info_fn(), "vmem_capacity_bytes", None)
            if vb:
                cfg["vmem_bytes"] = int(vb)
    except Exception:
        pass
    return cfg


def _chunk_target(dtype, cfg):
    """Max chunk width such that the 0/1-matmul stays at/below the HBM roofline."""
    it = jnp.dtype(dtype).itemsize
    peak = float(cfg["peak_bf16_flops"])
    if it >= 4:
        peak /= 6.0            # f32 at HIGHEST precision runs multi-pass on the MXU
    flops_per_elem = peak * (2.0 * it) / float(cfg["hbm_bw"])
    t = int(flops_per_elem // 2)   # out = x @ P costs 2*w flops per element
    t = (t // 128) * 128
    return int(min(1024, max(256, t)))


# ----------------------------------------------------------------------------
# Chunking + packed permutation-matrix construction (host side, deterministic).
# ----------------------------------------------------------------------------
def _build_chunks(segments, chunk_target):
    """Group consecutive segments into column chunks of ~chunk_target lanes."""
    chunks = []
    cur, cur_w, cur_off, off = [], 0, 0, 0
    for u, v in segments:
        w = int(u) * int(v)
        if cur and cur_w + w > chunk_target:
            chunks.append((cur_off, cur_w, tuple(cur)))
            cur, cur_w = [], 0
        if not cur:
            cur_off = off
        cur.append((int(u), int(v)))
        cur_w += w
        off += w
    if cur:
        chunks.append((cur_off, cur_w, tuple(cur)))
    return chunks


def _build_chunk_perm(chunks, D):
    """Packed block-diagonal permutation: for each non-copy chunk at column c0 with
    width w, rows [0:w] of columns [c0:c0+w] hold the (w, w) 0/1 block mapping each
    member segment (u, v) -> (v, u) (identity for trivial members)."""
    widths = [w for _, w, segs in chunks if not _all_trivial(segs)]
    rows = max(8, max(widths) if widths else 8)
    P = np.zeros((rows, D), dtype=np.float32)
    for c0, w, segs in chunks:
        if _all_trivial(segs):
            continue
        loc = 0
        for u, v in segs:
            if u == 1 or v == 1:
                for t in range(u * v):
                    P[loc + t, c0 + loc + t] = 1.0
            else:
                for i in range(u):
                    for j in range(v):
                        P[loc + i * v + j, c0 + loc + j * u + i] = 1.0
            loc += u * v
    return P


# ----------------------------------------------------------------------------
# Kernel
# ----------------------------------------------------------------------------
def _make_chunk_kernel(chunk_info):
    """chunk_info: static tuple of (col_offset, width, is_copy)."""

    def kernel(x_ref, p_ref, o_ref):
        # Garbage rows of a ragged last block stay confined to garbage rows
        # (the matmul is row-independent) and are masked on writeback by Pallas.
        for c0, w, is_copy in chunk_info:
            xs = x_ref[:, c0:c0 + w]
            if is_copy:
                o_ref[:, c0:c0 + w] = xs
            else:
                # precision=HIGHEST keeps the 0/1 permutation exact for f32 inputs
                # (default precision may round operands to bf16 on the MXU).
                o_ref[:, c0:c0 + w] = jnp.dot(
                    xs, p_ref[:w, c0:c0 + w],
                    preferred_element_type=jnp.float32,
                    precision=jax.lax.Precision.HIGHEST,
                ).astype(o_ref.dtype)

    return kernel


# ----------------------------------------------------------------------------
# Tiling / pallas_call wrapper
# ----------------------------------------------------------------------------
def _choose_rows(N, D, itemsize, block_target, p_bytes, cfg):
    """Row tile: as large as the VMEM budget allows (dtype-aware sublane multiple),
    never larger than needed; on multi-TC chips keep >= 2 grid steps per core."""
    sub = max(8, 32 // max(1, itemsize))
    vmem_budget = int(cfg["vmem_bytes"]) // 2
    bytes_per_row = 4 * D * itemsize               # double-buffered input + output tiles
    # TODO(synk): pipeline_mode=pl.Buffered(1) on the P spec would free its 2nd buffer.
    avail = max(vmem_budget - 2 * p_bytes, bytes_per_row * sub)
    rows = min(int(block_target), int(avail // bytes_per_row))
    rows = max(sub, (rows // sub) * sub)
    rows = min(rows, _round_up(N, sub))
    cores = int(cfg["num_cores"])
    if cores > 1:
        min_steps = 2 * cores                      # >= 2 steps/core keeps each pipeline fed
        if N > min_steps * sub:
            rows = min(rows, max(sub, _round_up(pl.cdiv(N, min_steps), sub)))
    return max(sub, rows)


def _transpose_chunks_pallas(x2d, perm, *, chunks, block_rows, cfg):
    N, D = x2d.shape
    itemsize = jnp.dtype(x2d.dtype).itemsize
    p_rows, p_cols = perm.shape
    p_bytes = p_rows * p_cols * itemsize

    rows = _choose_rows(N, D, itemsize, block_rows, p_bytes, cfg)
    grid = (pl.cdiv(N, rows),)                     # no host-side padding of N

    need = 4 * rows * D * itemsize + 2 * p_bytes
    vmem_limit = int(min(int(cfg["vmem_bytes"]) * 3 // 4,
                         max(need + (8 << 20), 32 << 20)))
    vmem_limit = max(vmem_limit, need + (1 << 20))

    # Pure data movement: report a bandwidth-dominated cost so XLA overlaps this
    # call with neighbouring HBM-bound ops instead of treating it as compute-heavy.
    cost = pl.CostEstimate(
        flops=0, transcendentals=0,
        bytes_accessed=(2 * N * D + p_rows * p_cols) * itemsize,
    )

    return pl.pallas_call(
        _make_chunk_kernel(chunks),
        out_shape=jax.ShapeDtypeStruct((N, D), x2d.dtype),
        grid_spec=pltpu.PrefetchScalarGridSpec(
            num_scalar_prefetch=0,
            grid=grid,
            in_specs=[
                pl.BlockSpec((rows, D), lambda i: (i, 0)),          # x row tile
                pl.BlockSpec((p_rows, p_cols), lambda i: (0, 0)),    # packed P (resident)
            ],
            out_specs=pl.BlockSpec((rows, D), lambda i: (i, 0)),
        ),
        compiler_params=pltpu.CompilerParams(
            dimension_semantics=("parallel",),
            vmem_limit_bytes=vmem_limit,
        ),
        cost_estimate=cost,
    )(x2d, perm)


def _forward_impl(x, perm, *, fold_k, chunks, block_rows, cfg):
    lead = x.shape[:-1]
    D = x.shape[-1]
    N = int(np.prod(lead)) if lead else 1
    x2d = x.reshape(N, D)
    n_pad = (-N) % fold_k if fold_k > 1 else 0
    if n_pad:
        # Only taken when no fold factor divides N; costs one extra pass over x.
        x2d = jnp.pad(x2d, ((0, n_pad), (0, 0)))
    if fold_k > 1:
        x2d = x2d.reshape((N + n_pad) // fold_k, fold_k * D)   # lane-dense fold
    out2d = _transpose_chunks_pallas(x2d, perm, chunks=chunks,
                                     block_rows=block_rows, cfg=cfg)
    if fold_k > 1:
        out2d = out2d.reshape(N + n_pad, D)
    if n_pad:
        out2d = out2d[:N]
    return out2d.reshape(lead + (D,))


# ----------------------------------------------------------------------------
# Pure-JAX reference (mirrors the torch.fx fallback path).
# ----------------------------------------------------------------------------
def _reference_transpose(x, *, segments):
    outs = []
    off = 0
    for u, v in segments:
        seg = x[..., off:off + u * v].reshape(x.shape[:-1] + (u, v))
        outs.append(jnp.swapaxes(seg, -1, -2).reshape(x.shape[:-1] + (u * v,)))
        off += u * v
    return jnp.concatenate(outs, axis=-1)


# ----------------------------------------------------------------------------
# Module-equivalent wrapper
# ----------------------------------------------------------------------------
class TransposeIrrepsLayout:
    """JAX/Pallas equivalent of cuequivariance_torch TransposeIrrepsLayout.

    irreps: list of (mul, ir_dim) pairs.
    source/target: "mul_ir" or "ir_mul".
    """

    def __init__(self, irreps, *, source, target, block_rows=1024):
        if (source, target) == ("mul_ir", "ir_mul"):
            segments = tuple((int(mul), int(ird)) for mul, ird in irreps)
        elif (source, target) == ("ir_mul", "mul_ir"):
            segments = tuple((int(ird), int(mul)) for mul, ird in irreps)
        else:
            segments = None          # identity (matches torch.nn.Identity branch)

        self.source, self.target = source, target
        self.segments = segments
        self._is_identity = segments is None or _all_trivial(segments)
        self._dim = None if segments is None else sum(u * v for u, v in segments)

        if self._is_identity:
            self._ref = None
            return

        self._cfg = _tpu_config()
        self._block_rows = int(block_rows)
        self._fold_k_max = 1 if self._dim >= 128 else max(1, _FOLD_TARGET_LANES // self._dim)
        self._has_huge_segment = any(
            u > 1 and v > 1 and u * v > _HUGE_SEGMENT for u, v in segments)
        self._impl_cache = {}
        self._ref = jax.jit(functools.partial(_reference_transpose, segments=segments))

    def __repr__(self):
        return f"TransposeIrrepsLayout({self.source} -> {self.target})"

    # -- helpers -------------------------------------------------------------
    def _pick_fold_k(self, N):
        k = self._fold_k_max
        if k <= 1 or N % k == 0:
            return k
        k_min = -(-128 // self._dim)          # smallest fold that is still lane-dense
        for kk in range(k, k_min - 1, -1):    # prefer a fold factor that divides N
            if N % kk == 0:
                return kk
        return k                              # no divisor: forward pads N up to k

    def _build_impl(self, dt, fold_k):
        segs = self.segments * fold_k
        d_work = self._dim * fold_k
        target = _chunk_target(dt, self._cfg)
        chunks = _build_chunks(segs, target)
        perm_np = _build_chunk_perm(chunks, d_work)
        itemsize = dt.itemsize
        p_bytes = perm_np.size * itemsize
        if 2 * p_bytes + 4 * 32 * d_work * itemsize > int(0.7 * self._cfg["vmem_bytes"]):
            # TODO(synk): extremely wide layouts need a DMA-gather permutation
            # kernel (no resident P); fall back to the pure-JAX path for now.
            return None
        perm = jnp.asarray(perm_np, dtype=dt)
        chunk_info = tuple((int(c0), int(w), _all_trivial(s)) for c0, w, s in chunks)
        fn = jax.jit(functools.partial(
            _forward_impl, fold_k=int(fold_k), chunks=chunk_info,
            block_rows=self._block_rows, cfg=self._cfg))
        return perm, fn

    # -- forward -------------------------------------------------------------
    def __call__(self, x):
        if self._is_identity:
            return x
        if x.shape[-1] != self._dim:
            raise ValueError(f"last dim {x.shape[-1]} != expected {self._dim}")
        dt = jnp.dtype(x.dtype)
        if (not jnp.issubdtype(dt, jnp.floating)) or dt.itemsize > 4 or self._has_huge_segment:
            # TODO(synk): integer / f64 dtypes and very large (u, v) segments need a
            # gather/DMA or XLU-transpose path; the MXU 0/1-matmul trick only applies
            # to <=32-bit floats and blows up for huge blocks.
            return self._ref(x)
        lead = x.shape[:-1]
        N = int(np.prod(lead)) if lead else 1
        fold_k = self._pick_fold_k(N) if N > 0 else 1
        key = (dt, fold_k)
        if key not in self._impl_cache:
            self._impl_cache[key] = self._build_impl(dt, fold_k)
        entry = self._impl_cache[key]
        if entry is None:
            return self._ref(x)
        perm, fn = entry
        return fn(x, perm)


# ----------------------------------------------------------------------------
# Self-test
# ----------------------------------------------------------------------------
if __name__ == "__main__":
    # Example irreps: "2x0e + 3x1o + 2x2e" -> [(mul, ir.dim)] = [(2,1),(3,3),(2,5)]
    irreps = [(2, 1), (3, 3), (2, 5)]          # D = 21 (< 128 -> lane-dense fold path)
    fwd = TransposeIrrepsLayout(irreps, source="mul_ir", target="ir_mul")
    inv = TransposeIrrepsLayout(irreps, source="ir_mul", target="mul_ir")

    key = jax.random.PRNGKey(0)
    batch, seq, D = 2, 9, 21
    x = jax.random.normal(key, (batch, seq, D), dtype=jnp.float32)

    y = jax.block_until_ready(fwd(x))
    y_ref = _reference_transpose(x, segments=fwd.segments)
    assert y.shape == x.shape
    np.testing.assert_allclose(np.asarray(y), np.asarray(y_ref), rtol=1e-6, atol=1e-6)

    # Round-trip ir_mul -> mul_ir recovers the input.
    x_back = jax.block_until_ready(inv(y))
    np.testing.assert_allclose(np.asarray(x_back), np.asarray(x), rtol=1e-6, atol=1e-6)

    # Larger leading dims: multiple row tiles, fold factor chosen to divide N.
    x_big = jax.random.normal(jax.random.PRNGKey(2), (4, 640, D), dtype=jnp.float32)
    y_big = jax.block_until_ready(fwd(x_big))
    np.testing.assert_allclose(
        np.asarray(y_big),
        np.asarray(_reference_transpose(x_big, segments=fwd.segments)),
        rtol=1e-6, atol=1e-6)

    # N with no usable fold divisor -> padded fold path.
    x_odd = jax.random.normal(jax.random.PRNGKey(3), (1, 5, D), dtype=jnp.float32)
    y_odd = jax.block_until_ready(fwd(x_odd))
    np.testing.assert_allclose(
        np.asarray(y_odd),
        np.asarray(_reference_transpose(x_odd, segments=fwd.segments)),
        rtol=1e-6, atol=1e-6)

    # bf16 path (permutation stays exact).
    xb = x.astype(jnp.bfloat16)
    yb = jax.block_until_ready(fwd(xb))
    np.testing.assert_allclose(
        np.asarray(yb, dtype=np.float32),
        np.asarray(_reference_transpose(xb, segments=fwd.segments), dtype=np.float32),
        rtol=0, atol=0)

    # Wide layout (D >= 128): chunked block-diagonal path (copy + matmul chunks).
    irreps_wide = [(128, 1), (128, 3), (128, 5)]   # D = 1152
    fwd_wide = TransposeIrrepsLayout(irreps_wide, source="mul_ir", target="ir_mul")
    xw = jax.random.normal(jax.random.PRNGKey(4), (2, 64, 1152), dtype=jnp.float32)
    yw = jax.block_until_ready(fwd_wide(xw))
    np.testing.assert_allclose(
        np.asarray(yw),
        np.asarray(_reference_transpose(xw, segments=fwd_wide.segments)),
        rtol=1e-6, atol=1e-6)

    # Trivial segments (all ir.dim == 1) -> identity path.
    mod_id = TransposeIrrepsLayout([(4, 1), (3, 1)], source="mul_ir", target="ir_mul")
    x_id = jax.random.normal(jax.random.PRNGKey(1), (batch, 7), dtype=jnp.float32)
    y_id = jax.block_until_ready(mod_id(x_id))
    np.testing.assert_allclose(np.asarray(y_id), np.asarray(x_id))

    print("KERNEL_OK")
</pallas_src>

<mosaic_0001>
module attributes {stable_mosaic.version = 11 : i64} {
  func.func @kernel(%arg0: i32, %arg1: memref<8x189xf32, #tpu.memory_space<vmem>>, %arg2: memref<189x189xf32, #tpu.memory_space<vmem>>, %arg3: memref<8x189xf32, #tpu.memory_space<vmem>>) attributes {dimension_semantics = [#tpu.dimension_semantics<parallel>], iteration_bounds = array<i64: 1>, scalar_prefetch = 0 : i64, scratch_operands = 0 : i64, tpu.core_type = #tpu.core_type<tc>, window_params = [{transform_indices = @transform_0, window_bounds = array<i64: 8, 189>}, {pipeline_mode = #tpu.pipeline_mode<synchronous>, transform_indices = @transform_1, window_bounds = array<i64: 189, 189>}, {transform_indices = @transform_2, window_bounds = array<i64: 8, 189>}]} {
    %c0 = arith.constant 0 : index
    %c0_0 = arith.constant 0 : index
    %0 = vector.load %arg1[%c0, %c0_0] : memref<8x189xf32, #tpu.memory_space<vmem>>, vector<8x189xf32>
    %c0_1 = arith.constant 0 : index
    %c0_2 = arith.constant 0 : index
    %1 = vector.load %arg2[%c0_1, %c0_2] : memref<189x189xf32, #tpu.memory_space<vmem>>, vector<189x189xf32>
    %cst = arith.constant dense<0.000000e+00> : vector<8x189xf32>
    %2 = tpu.matmul %0, %1, %cst {dimension_numbers = #tpu.dot_dimension_numbers<[1], [0], [0], [1], [0, 0, 1, 1], [], []>, precision = #tpu.contract_precision<fp32>} : vector<8x189xf32>, vector<189x189xf32>, vector<8x189xf32> -> vector<8x189xf32>
    %c0_3 = arith.constant 0 : index
    %c0_4 = arith.constant 0 : index
    %3 = vector.load %arg3[%c0_3, %c0_4] : memref<8x189xf32, #tpu.memory_space<vmem>>, vector<8x189xf32>
    tpu.vector_store %arg3[%c0_3, %c0_4], %2 {strides = array<i32>} : memref<8x189xf32, #tpu.memory_space<vmem>>, vector<8x189xf32>,
    return
  }
  func.func @transform_0(%arg0: i32) -> (i32, i32) {
    %c0_i32 = arith.constant 0 : i32
    %c0_i32_0 = arith.constant 0 : i32
    return %arg0, %c0_i32 : i32, i32
  }
  func.func @transform_1(%arg0: i32) -> (i32, i32) {
    %c0_i32 = arith.constant 0 : i32
    %c0_i32_0 = arith.constant 0 : i32
    %c0_i32_1 = arith.constant 0 : i32
    return %c0_i32, %c0_i32_0 : i32, i32
  }
  func.func @transform_2(%arg0: i32) -> (i32, i32) {
    %c0_i32 = arith.constant 0 : i32
    %c0_i32_0 = arith.constant 0 : i32
    return %arg0, %c0_i32 : i32, i32
  }
}

</mosaic_0001>

<llo_original>
// kernel: _forward_impl.1
$region0: #{_forward_impl.1}
  #allocation0 [shape = 'u32[]', space=smem, size = 0x4, offset = 0x4, fixed_abs, tag = 'smem constant byte address 0x4 - core index']
  #allocation1 [shape = 'u32[72,128]{1,0:T(1,128)}', space=vmem, size = 0x9000, scoped, tag = 'internal scratch']
  %s0 = inlined_call_operand.vmem [shape: f32[2,189], index: 0, kind: input, shape index: {}]
  %s1 = inlined_call_operand.hbm [shape: f32[189,189], index: 1, kind: input, shape index: {}]
  %s2 = inlined_call_operand.vmem [shape: f32[2,189], index: 2, kind: output, shape index: {}]
  %s3 = sld [smem:[#allocation0]]
  $region52: #{_forward_impl.1} parent=0
    _
  %s5 = ssub.s32 1, %s3
  %s6 = scalar_select 0, %s5, %s3
  $region1: #{_forward_impl.1} parent=0
    #allocation2 [shape = 'u8[196608]{0}', space=vmem, size = 0x30000, scoped, tag = 'input window, operand 1, single buffered']
    #allocation3 [shape = 's32[1]{0}', space=sflag, size = 0x4, scoped, tag = 'scoped memory for _forward_impl.1']
    #allocation4 [shape = 'u8[8192]{0}', space=vmem, size = 0x2000, scoped, tag = 'output window, operand 0, single buffered']
    %7 = vsyncpa [#allocation3], 0
    // Predicated region
    $region2: #{_forward_impl.1} parent=1 // pred_check
      _
    $region3: #{_forward_impl.1} parent=1 // pred_check_branch
      %9 = sbr.rel (0) target = $region5
    $region4: #{_forward_impl.1} parent=1 // pred_region
      _
    $region5: #{_forward_impl.1} parent=1 // pred_fallthru
      _
    // Predicated region
    $region6: #{_forward_impl.1} parent=1 // pred_check
      _
    $region7: #{_forward_impl.1} parent=1 // pred_check_branch
      %11 = sbr.rel (0) target = $region9
    $region8: #{_forward_impl.1} parent=1 // pred_region
      %13 = vsyncadd [#allocation3], 0
      %s14 = sshll.u32 %s1, 4
      %s15 = int_to_ptr.hbm [resolvable:$true] %s14
      %s16 = sshll.u32 [#allocation2], 4
      %s17 = int_to_ptr.vmem [resolvable:$true] %s16
      %22 = dma.hbm_to_vmem [thread:$0]  %s15, 6144, %s17, [#allocation3], 256, 256, 16
    $region9: #{_forward_impl.1} parent=1 // pred_fallthru
      _
    // Predicated region
    $region10: #{_forward_impl.1} parent=1 // pred_check
      _
    $region11: #{_forward_impl.1} parent=1 // pred_check_branch
      %24 = sbr.rel (0) target = $region13
    $region12: #{_forward_impl.1} parent=1 // pred_region
      %26 = dma.done [#allocation3], 6144
    $region13: #{_forward_impl.1} parent=1 // pred_fallthru
      _
    %v27 = vld [vmem:[%s0] sm:$0xf]
    %v28 = vld [vmem:[%s0 + $0x4] sm:$0xf]
    %v29 = vld [vmem:[%s0 + $0x8] sm:$0xf]
    %v30 = vld [vmem:[%s0 + $0xc] sm:$0xf]
    %v31 = vld [vmem:[#allocation2] sm:$0xff]
    %v32 = vld [vmem:[#allocation2 + $0x8] sm:$0xff]
    %v33 = vld [vmem:[#allocation2 + $0x10] sm:$0xff]
    %v34 = vld [vmem:[#allocation2 + $0x18] sm:$0xff]
    %v35 = vld [vmem:[#allocation2 + $0x20] sm:$0xff]
    %v36 = vld [vmem:[#allocation2 + $0x28] sm:$0xff]
    %v37 = vld [vmem:[#allocation2 + $0x30] sm:$0xff]
    %v38 = vld [vmem:[#allocation2 + $0x38] sm:$0xff]
    %v39 = vld [vmem:[#allocation2 + $0x40] sm:$0xff]
    %v40 = vld [vmem:[#allocation2 + $0x48] sm:$0xff]
    %v41 = vld [vmem:[#allocation2 + $0x50] sm:$0xff]
    %v42 = vld [vmem:[#allocation2 + $0x58] sm:$0xff]
    %v43 = vld [vmem:[#allocation2 + $0x60] sm:$0xff]
    %v44 = vld [vmem:[#allocation2 + $0x68] sm:$0xff]
    %v45 = vld [vmem:[#allocation2 + $0x70] sm:$0xff]
    %v46 = vld [vmem:[#allocation2 + $0x78] sm:$0xff]
    %v47 = vld [vmem:[#allocation2 + $0x80] sm:$0xff]
    %v48 = vld [vmem:[#allocation2 + $0x88] sm:$0xff]
    %v49 = vld [vmem:[#allocation2 + $0x90] sm:$0xff]
    %v50 = vld [vmem:[#allocation2 + $0x98] sm:$0xff]
    %v51 = vld [vmem:[#allocation2 + $0xa0] sm:$0xff]
    %v52 = vld [vmem:[#allocation2 + $0xa8] sm:$0xff]
    %v53 = vld [vmem:[#allocation2 + $0xb0] sm:$0xff]
    %v54 = vld [vmem:[#allocation2 + $0xb8] sm:$0xff]
    %v55 = vld [vmem:[#allocation2 + $0xc0] sm:$0xff]
    %v56 = vld [vmem:[#allocation2 + $0xc8] sm:$0xff]
    %v57 = vld [vmem:[#allocation2 + $0xd0] sm:$0xff]
    %v58 = vld [vmem:[#allocation2 + $0xd8] sm:$0xff]
    %v59 = vld [vmem:[#allocation2 + $0xe0] sm:$0xff]
    %v60 = vld [vmem:[#allocation2 + $0xe8] sm:$0xff]
    %v61 = vld [vmem:[#allocation2 + $0xf0] sm:$0xff]
    %v62 = vld [vmem:[#allocation2 + $0xf8] sm:$0xff]
    %v63 = vld [vmem:[#allocation2 + $0x100] sm:$0xff]
    %v64 = vld [vmem:[#allocation2 + $0x108] sm:$0xff]
    %v65 = vld [vmem:[#allocation2 + $0x110] sm:$0xff]
    %v66 = vld [vmem:[#allocation2 + $0x118] sm:$0xff]
    %v67 = vld [vmem:[#allocation2 + $0x120] sm:$0xff]
    %v68 = vld [vmem:[#allocation2 + $0x128] sm:$0xff]
    %v69 = vld [vmem:[#allocation2 + $0x130] sm:$0xff]
    %v70 = vld [vmem:[#allocation2 + $0x138] sm:$0xff]
    %v71 = vld [vmem:[#allocation2 + $0x140] sm:$0xff]
    %v72 = vld [vmem:[#allocation2 + $0x148] sm:$0xff]
    %v73 = vld [vmem:[#allocation2 + $0x150] sm:$0xff]
    %v74 = vld [vmem:[#allocation2 + $0x158] sm:$0xff]
    %v75 = vld [vmem:[#allocation2 + $0x160] sm:$0xff]
    %v76 = vld [vmem:[#allocation2 + $0x168] sm:$0xff]
    %v77 = vld [vmem:[#allocation2 + $0x170] sm:$0x1f]
    %v78 = vld [vmem:[#allocation2 + $0x178] sm:$0x1f]
    %83 = vst [vmem:[#allocation1] ss:$4 sm:$0xff] %v27
    %s84 = scalar_lea.vmem [#allocation1], 1
    %85 = vst [vmem:[%s84] ss:$4 sm:$0xff] %v28
    %s86 = scalar_lea.vmem [#allocation1], 2
    %87 = vst [vmem:[%s86] ss:$4 sm:$0xff] %v29
    %s88 = scalar_lea.vmem [#allocation1], 3
    %89 = vst [vmem:[%s88] ss:$4 sm:$0xff] %v30
    %v90 = vld.sshfl [vmem:[#allocation1] sm:$0xff pattern:$0x73625140]
    %v91 = vld.sshfl [vmem:[#allocation1 + $0x8] sm:$0xff pattern:$0x73625140]
    %vm93 = vcmask 498688
    %v94 = vsel %vm93, %v91, 0
    %vm96 = vcmask 1044480
    %v98 = vsel %vm96, %v77, 0
    %v101 = vsel %vm96, %v78, 0
    %v103 = vand.u32 %v61, 4294901760
    %104 = vmatpush.msra.mxu0 %v103
    %v105 = vand.u32 %v59, 4294901760
    %106 = vmatpush.msra.mxu0 %v105
    %v107 = vand.u32 %v57, 4294901760
    %108 = vmatpush.msra.mxu0 %v107
    %v109 = vand.u32 %v55, 4294901760
    %110 = vmatpush.msra.mxu0 %v109
    %v111 = vand.u32 %v53, 4294901760
    %112 = vmatpush.msra.mxu0 %v111
    %v113 = vand.u32 %v51, 4294901760
    %114 = vmatpush.msra.mxu0 %v113
    %v115 = vand.u32 %v49, 4294901760
    %116 = vmatpush.msra.mxu0 %v115
    %v117 = vand.u32 %v47, 4294901760
    %118 = vmatpush.msra.mxu0 %v117
    %v119 = vand.u32 %v45, 4294901760
    %120 = vmatpush.msra.mxu0 %v119
    %v121 = vand.u32 %v43, 4294901760
    %122 = vmatpush.msra.mxu0 %v121
    %v123 = vand.u32 %v41, 4294901760
    %124 = vmatpush.msra.mxu0 %v123
    %v125 = vand.u32 %v39, 4294901760
    %126 = vmatpush.msra.mxu0 %v125
    %v127 = vand.u32 %v37, 4294901760
    %128 = vmatpush.msra.mxu0 %v127
    %v129 = vand.u32 %v35, 4294901760
    %130 = vmatpush.msra.mxu0 %v129
    %v131 = vand.u32 %v33, 4294901760
    %132 = vmatpush.msra.mxu0 %v131
    %v133 = vand.u32 %v31, 4294901760
    %134 = vmatpush.msra.mxu0 %v133
    %v135 = vand.u32 %v90, 4294901760
    %v136 = vsub.f32 %v90, %v135
    %v137 = vand.u32 %v136, 4294901760
    %v138 = vsub.f32 %v136, %v137
    %v139 = vand.u32 %v138, 4294901760
    %140 = vmatmul.f32.gmra.mxu0 %v139
    %v141 = vpop.f32.mrf.mxu0
    %v142 = vadd.f32 0.0, %v141
    %143 = vdwg.mxu0
    %v144 = vand.u32 %v61, 4294901760
    %v145 = vsub.f32 %v61, %v144
    %v146 = vand.u32 %v145, 4294901760
    %v147 = vsub.f32 %v145, %v146
    %v148 = vand.u32 %v147, 4294901760
    %149 = vmatpush.msra.mxu0 %v148
    %v150 = vand.u32 %v59, 4294901760
    %v151 = vsub.f32 %v59, %v150
    %v152 = vand.u32 %v151, 4294901760
    %v153 = vsub.f32 %v151, %v152
    %v154 = vand.u32 %v153, 4294901760
    %155 = vmatpush.msra.mxu0 %v154
    %v156 = vand.u32 %v57, 4294901760
    %v157 = vsub.f32 %v57, %v156
    %v158 = vand.u32 %v157, 4294901760
    %v159 = vsub.f32 %v157, %v158
    %v160 = vand.u32 %v159, 4294901760
    %161 = vmatpush.msra.mxu0 %v160
    %v162 = vand.u32 %v55, 4294901760
    %v163 = vsub.f32 %v55, %v162
    %v164 = vand.u32 %v163, 4294901760
    %v165 = vsub.f32 %v163, %v164
    %v166 = vand.u32 %v165, 4294901760
    %167 = vmatpush.msra.mxu0 %v166
    %v168 = vand.u32 %v53, 4294901760
    %v169 = vsub.f32 %v53, %v168
    %v170 = vand.u32 %v169, 4294901760
    %v171 = vsub.f32 %v169, %v170
    %v172 = vand.u32 %v171, 4294901760
    %173 = vmatpush.msra.mxu0 %v172
    %v174 = vand.u32 %v51, 4294901760
    %v175 = vsub.f32 %v51, %v174
    %v176 = vand.u32 %v175, 4294901760
    %v177 = vsub.f32 %v175, %v176
    %v178 = vand.u32 %v177, 4294901760
    %179 = vmatpush.msra.mxu0 %v178
    %v180 = vand.u32 %v49, 4294901760
    %v181 = vsub.f32 %v49, %v180
    %v182 = vand.u32 %v181, 4294901760
    %v183 = vsub.f32 %v181, %v182
    %v184 = vand.u32 %v183, 4294901760
    %185 = vmatpush.msra.mxu0 %v184
    %v186 = vand.u32 %v47, 4294901760
    %v187 = vsub.f32 %v47, %v186
    %v188 = vand.u32 %v187, 4294901760
    %v189 = vsub.f32 %v187, %v188
    %v190 = vand.u32 %v189, 4294901760
    %191 = vmatpush.msra.mxu0 %v190
    %v192 = vand.u32 %v45, 4294901760
    %v193 = vsub.f32 %v45, %v192
    %v194 = vand.u32 %v193, 4294901760
    %v195 = vsub.f32 %v193, %v194
    %v196 = vand.u32 %v195, 4294901760
    %197 = vmatpush.msra.mxu0 %v196
    %v198 = vand.u32 %v43, 4294901760
    %v199 = vsub.f32 %v43, %v198
    %v200 = vand.u32 %v199, 4294901760
    %v201 = vsub.f32 %v199, %v200
    %v202 = vand.u32 %v201, 4294901760
    %203 = vmatpush.msra.mxu0 %v202
    %v204 = vand.u32 %v41, 4294901760
    %v205 = vsub.f32 %v41, %v204
    %v206 = vand.u32 %v205, 4294901760
    %v207 = vsub.f32 %v205, %v206
    %v208 = vand.u32 %v207, 4294901760
    %209 = vmatpush.msra.mxu0 %v208
    %v210 = vand.u32 %v39, 4294901760
    %v211 = vsub.f32 %v39, %v210
    %v212 = vand.u32 %v211, 4294901760
    %v213 = vsub.f32 %v211, %v212
    %v214 = vand.u32 %v213, 4294901760
    %215 = vmatpush.msra.mxu0 %v214
    %v216 = vand.u32 %v37, 4294901760
    %v217 = vsub.f32 %v37, %v216
    %v218 = vand.u32 %v217, 4294901760
    %v219 = vsub.f32 %v217, %v218
    %v220 = vand.u32 %v219, 4294901760
    %221 = vmatpush.msra.mxu0 %v220
    %v222 = vand.u32 %v35, 4294901760
    %v223 = vsub.f32 %v35, %v222
    %v224 = vand.u32 %v223, 4294901760
    %v225 = vsub.f32 %v223, %v224
    %v226 = vand.u32 %v225, 4294901760
    %227 = vmatpush.msra.mxu0 %v226
    %v228 = vand.u32 %v33, 4294901760
    %v229 = vsub.f32 %v33, %v228
    %v230 = vand.u32 %v229, 4294901760
    %v231 = vsub.f32 %v229, %v230
    %v232 = vand.u32 %v231, 4294901760
    %233 = vmatpush.msra.mxu0 %v232
    %v234 = vand.u32 %v31, 4294901760
    %v235 = vsub.f32 %v31, %v234
    %v236 = vand.u32 %v235, 4294901760
    %v237 = vsub.f32 %v235, %v236
    %v238 = vand.u32 %v237, 4294901760
    %239 = vmatpush.msra.mxu0 %v238
    %v240 = vand.u32 %v90, 4294901760
    %241 = vmatmul.f32.gmra.mxu0 %v240
    %v242 = vpop.f32.mrf.mxu0
    %v243 = vadd.f32 %v142, %v242
    %244 = vdwg.mxu0
    %v245 = vand.u32 %v61, 4294901760
    %v246 = vsub.f32 %v61, %v245
    %247 = vmatpush.msra.mxu0 %v246
    %v248 = vand.u32 %v59, 4294901760
    %v249 = vsub.f32 %v59, %v248
    %250 = vmatpush.msra.mxu0 %v249
    %v251 = vand.u32 %v57, 4294901760
    %v252 = vsub.f32 %v57, %v251
    %253 = vmatpush.msra.mxu0 %v252
    %v254 = vand.u32 %v55, 4294901760
    %v255 = vsub.f32 %v55, %v254
    %256 = vmatpush.msra.mxu0 %v255
    %v257 = vand.u32 %v53, 4294901760
    %v258 = vsub.f32 %v53, %v257
    %259 = vmatpush.msra.mxu0 %v258
    %v260 = vand.u32 %v51, 4294901760
    %v261 = vsub.f32 %v51, %v260
    %262 = vmatpush.msra.mxu0 %v261
    %v263 = vand.u32 %v49, 4294901760
    %v264 = vsub.f32 %v49, %v263
    %265 = vmatpush.msra.mxu0 %v264
    %v266 = vand.u32 %v47, 4294901760
    %v267 = vsub.f32 %v47, %v266
    %268 = vmatpush.msra.mxu0 %v267
    %v269 = vand.u32 %v45, 4294901760
    %v270 = vsub.f32 %v45, %v269
    %271 = vmatpush.msra.mxu0 %v270
    %v272 = vand.u32 %v43, 4294901760
    %v273 = vsub.f32 %v43, %v272
    %274 = vmatpush.msra.mxu0 %v273
    %v275 = vand.u32 %v41, 4294901760
    %v276 = vsub.f32 %v41, %v275
    %277 = vmatpush.msra.mxu0 %v276
    %v278 = vand.u32 %v39, 4294901760
    %v279 = vsub.f32 %v39, %v278
    %280 = vmatpush.msra.mxu0 %v279
    %v281 = vand.u32 %v37, 4294901760
    %v282 = vsub.f32 %v37, %v281
    %283 = vmatpush.msra.mxu0 %v282
    %v284 = vand.u32 %v35, 4294901760
    %v285 = vsub.f32 %v35, %v284
    %286 = vmatpush.msra.mxu0 %v285
    %v287 = vand.u32 %v33, 4294901760
    %v288 = vsub.f32 %v33, %v287
    %289 = vmatpush.msra.mxu0 %v288
    %v290 = vand.u32 %v31, 4294901760
    %v291 = vsub.f32 %v31, %v290
    %292 = vmatpush.msra.mxu0 %v291
    %v293 = vand.u32 %v90, 4294901760
    %v294 = vsub.f32 %v90, %v293
    %295 = vmatmul.f32.gmra.mxu0 %v294
    %v296 = vpop.f32.mrf.mxu0
    %v297 = vadd.f32 %v243, %v296
    %298 = vdwg.mxu0
    %v299 = vand.u32 %v61, 4294901760
    %300 = vmatpush.msra.mxu0 %v299
    %v301 = vand.u32 %v59, 4294901760
    %302 = vmatpush.msra.mxu0 %v301
    %v303 = vand.u32 %v57, 4294901760
    %304 = vmatpush.msra.mxu0 %v303
    %v305 = vand.u32 %v55, 4294901760
    %306 = vmatpush.msra.mxu0 %v305
    %v307 = vand.u32 %v53, 4294901760
    %308 = vmatpush.msra.mxu0 %v307
    %v309 = vand.u32 %v51, 4294901760
    %310 = vmatpush.msra.mxu0 %v309
    %v311 = vand.u32 %v49, 4294901760
    %312 = vmatpush.msra.mxu0 %v311
    %v313 = vand.u32 %v47, 4294901760
    %314 = vmatpush.msra.mxu0 %v313
    %v315 = vand.u32 %v45, 4294901760
    %316 = vmatpush.msra.mxu0 %v315
    %v317 = vand.u32 %v43, 4294901760
    %318 = vmatpush.msra.mxu0 %v317
    %v319 = vand.u32 %v41, 4294901760
    %320 = vmatpush.msra.mxu0 %v319
    %v321 = vand.u32 %v39, 4294901760
    %322 = vmatpush.msra.mxu0 %v321
    %v323 = vand.u32 %v37, 4294901760
    %324 = vmatpush.msra.mxu0 %v323
    %v325 = vand.u32 %v35, 4294901760
    %326 = vmatpush.msra.mxu0 %v325
    %v327 = vand.u32 %v33, 4294901760
    %328 = vmatpush.msra.mxu0 %v327
    %v329 = vand.u32 %v31, 4294901760
    %330 = vmatpush.msra.mxu0 %v329
    %v331 = vand.u32 %v90, 4294901760
    %v332 = vsub.f32 %v90, %v331
    %v333 = vand.u32 %v332, 4294901760
    %334 = vmatmul.f32.gmra.mxu0 %v333
    %v335 = vpop.f32.mrf.mxu0
    %v336 = vadd.f32 %v297, %v335
    %337 = vdwg.mxu0
    %v338 = vand.u32 %v61, 4294901760
    %v339 = vsub.f32 %v61, %v338
    %v340 = vand.u32 %v339, 4294901760
    %341 = vmatpush.msra.mxu0 %v340
    %v342 = vand.u32 %v59, 4294901760
    %v343 = vsub.f32 %v59, %v342
    %v344 = vand.u32 %v343, 4294901760
    %345 = vmatpush.msra.mxu0 %v344
    %v346 = vand.u32 %v57, 4294901760
    %v347 = vsub.f32 %v57, %v346
    %v348 = vand.u32 %v347, 4294901760
    %349 = vmatpush.msra.mxu0 %v348
    %v350 = vand.u32 %v55, 4294901760
    %v351 = vsub.f32 %v55, %v350
    %v352 = vand.u32 %v351, 4294901760
    %353 = vmatpush.msra.mxu0 %v352
    %v354 = vand.u32 %v53, 4294901760
    %v355 = vsub.f32 %v53, %v354
    %v356 = vand.u32 %v355, 4294901760
    %357 = vmatpush.msra.mxu0 %v356
    %v358 = vand.u32 %v51, 4294901760
    %v359 = vsub.f32 %v51, %v358
    %v360 = vand.u32 %v359, 4294901760
    %361 = vmatpush.msra.mxu0 %v360
    %v362 = vand.u32 %v49, 4294901760
    %v363 = vsub.f32 %v49, %v362
    %v364 = vand.u32 %v363, 4294901760
    %365 = vmatpush.msra.mxu0 %v364
    %v366 = vand.u32 %v47, 4294901760
    %v367 = vsub.f32 %v47, %v366
    %v368 = vand.u32 %v367, 4294901760
    %369 = vmatpush.msra.mxu0 %v368
    %v370 = vand.u32 %v45, 4294901760
    %v371 = vsub.f32 %v45, %v370
    %v372 = vand.u32 %v371, 4294901760
    %373 = vmatpush.msra.mxu0 %v372
    %v374 = vand.u32 %v43, 4294901760
    %v375 = vsub.f32 %v43, %v374
    %v376 = vand.u32 %v375, 4294901760
    %377 = vmatpush.msra.mxu0 %v376
    %v378 = vand.u32 %v41, 4294901760
    %v379 = vsub.f32 %v41, %v378
    %v380 = vand.u32 %v379, 4294901760
    %381 = vmatpush.msra.mxu0 %v380
    %v382 = vand.u32 %v39, 4294901760
    %v383 = vsub.f32 %v39, %v382
    %v384 = vand.u32 %v383, 4294901760
    %385 = vmatpush.msra.mxu0 %v384
    %v386 = vand.u32 %v37, 4294901760
    %v387 = vsub.f32 %v37, %v386
    %v388 = vand.u32 %v387, 4294901760
    %389 = vmatpush.msra.mxu0 %v388
    %v390 = vand.u32 %v35, 4294901760
    %v391 = vsub.f32 %v35, %v390
    %v392 = vand.u32 %v391, 4294901760
    %393 = vmatpush.msra.mxu0 %v392
    %v394 = vand.u32 %v33, 4294901760
    %v395 = vsub.f32 %v33, %v394
    %v396 = vand.u32 %v395, 4294901760
    %397 = vmatpush.msra.mxu0 %v396
    %v398 = vand.u32 %v31, 4294901760
    %v399 = vsub.f32 %v31, %v398
    %v400 = vand.u32 %v399, 4294901760
    %401 = vmatpush.msra.mxu0 %v400
    %v402 = vand.u32 %v90, 4294901760
    %403 = vmatmul.f32.gmra.mxu0 %v402
    %v404 = vpop.f32.mrf.mxu0
    %v405 = vadd.f32 %v336, %v404
    %406 = vdwg.mxu0
    %v407 = vand.u32 %v61, 4294901760
    %408 = vmatpush.msra.mxu0 %v407
    %v409 = vand.u32 %v59, 4294901760
    %410 = vmatpush.msra.mxu0 %v409
    %v411 = vand.u32 %v57, 4294901760
    %412 = vmatpush.msra.mxu0 %v411
    %v413 = vand.u32 %v55, 4294901760
    %414 = vmatpush.msra.mxu0 %v413
    %v415 = vand.u32 %v53, 4294901760
    %416 = vmatpush.msra.mxu0 %v415
    %v417 = vand.u32 %v51, 4294901760
    %418 = vmatpush.msra.mxu0 %v417
    %v419 = vand.u32 %v49, 4294901760
    %420 = vmatpush.msra.mxu0 %v419
    %v421 = vand.u32 %v47, 4294901760
    %422 = vmatpush.msra.mxu0 %v421
    %v423 = vand.u32 %v45, 4294901760
    %424 = vmatpush.msra.mxu0 %v423
    %v425 = vand.u32 %v43, 4294901760
    %426 = vmatpush.msra.mxu0 %v425
    %v427 = vand.u32 %v41, 4294901760
    %428 = vmatpush.msra.mxu0 %v427
    %v429 = vand.u32 %v39, 4294901760
    %430 = vmatpush.msra.mxu0 %v429
    %v431 = vand.u32 %v37, 4294901760
    %432 = vmatpush.msra.mxu0 %v431
    %v433 = vand.u32 %v35, 4294901760
    %434 = vmatpush.msra.mxu0 %v433
    %v435 = vand.u32 %v33, 4294901760
    %436 = vmatpush.msra.mxu0 %v435
    %v437 = vand.u32 %v31, 4294901760
    %438 = vmatpush.msra.mxu0 %v437
    %v439 = vand.u32 %v90, 4294901760
    %440 = vmatmul.f32.gmra.mxu0 %v439
    %v441 = vpop.f32.mrf.mxu0
    %v442 = vadd.f32 %v405, %v441
    %443 = vdwg.mxu0
    %444 = vmatpush.msra.mxu0 0.0
    %445 = vmatpush.msra.mxu0 0.0
    %446 = vmatpush.msra.mxu0 0.0
    %447 = vmatpush.msra.mxu0 0.0
    %448 = vmatpush.msra.mxu0 0.0
    %449 = vmatpush.msra.mxu0 0.0
    %450 = vmatpush.msra.mxu0 0.0
    %451 = vmatpush.msra.mxu0 0.0
    %v452 = vand.u32 %v98, 4294901760
    %453 = vmatpush.msra.mxu0 %v452
    %v454 = vand.u32 %v75, 4294901760
    %455 = vmatpush.msra.mxu0 %v454
    %v456 = vand.u32 %v73, 4294901760
    %457 = vmatpush.msra.mxu0 %v456
    %v458 = vand.u32 %v71, 4294901760
    %459 = vmatpush.msra.mxu0 %v458
    %v460 = vand.u32 %v69, 4294901760
    %461 = vmatpush.msra.mxu0 %v460
    %v462 = vand.u32 %v67, 4294901760
    %463 = vmatpush.msra.mxu0 %v462
    %v464 = vand.u32 %v65, 4294901760
    %465 = vmatpush.msra.mxu0 %v464
    %v466 = vand.u32 %v63, 4294901760
    %467 = vmatpush.msra.mxu0 %v466
    %v468 = vand.u32 %v94, 4294901760
    %v469 = vsub.f32 %v94, %v468
    %v470 = vand.u32 %v469, 4294901760
    %v471 = vsub.f32 %v469, %v470
    %v472 = vand.u32 %v471, 4294901760
    %473 = vmatmul.f32.gmra.mxu0 %v472
    %v474 = vpop.f32.mrf.mxu0
    %v475 = vadd.f32 %v442, %v474
    %476 = vdwg.mxu0
    %477 = vmatpush.msra.mxu0 0.0
    %478 = vmatpush.msra.mxu0 0.0
    %479 = vmatpush.msra.mxu0 0.0
    %480 = vmatpush.msra.mxu0 0.0
    %481 = vmatpush.msra.mxu0 0.0
    %482 = vmatpush.msra.mxu0 0.0
    %483 = vmatpush.msra.mxu0 0.0
    %484 = vmatpush.msra.mxu0 0.0
    %v485 = vand.u32 %v98, 4294901760
    %v486 = vsub.f32 %v98, %v485
    %v487 = vand.u32 %v486, 4294901760
    %v488 = vsub.f32 %v486, %v487
    %v489 = vand.u32 %v488, 4294901760
    %490 = vmatpush.msra.mxu0 %v489
    %v491 = vand.u32 %v75, 4294901760
    %v492 = vsub.f32 %v75, %v491
    %v493 = vand.u32 %v492, 4294901760
    %v494 = vsub.f32 %v492, %v493
    %v495 = vand.u32 %v494, 4294901760
    %496 = vmatpush.msra.mxu0 %v495
    %v497 = vand.u32 %v73, 4294901760
    %v498 = vsub.f32 %v73, %v497
    %v499 = vand.u32 %v498, 4294901760
    %v500 = vsub.f32 %v498, %v499
    %v501 = vand.u32 %v500, 4294901760
    %502 = vmatpush.msra.mxu0 %v501
    %v503 = vand.u32 %v71, 4294901760
    %v504 = vsub.f32 %v71, %v503
    %v505 = vand.u32 %v504, 4294901760
    %v506 = vsub.f32 %v504, %v505
    %v507 = vand.u32 %v506, 4294901760
    %508 = vmatpush.msra.mxu0 %v507
    %v509 = vand.u32 %v69, 4294901760
    %v510 = vsub.f32 %v69, %v509
    %v511 = vand.u32 %v510, 4294901760
    %v512 = vsub.f32 %v510, %v511
    %v513 = vand.u32 %v512, 4294901760
    %514 = vmatpush.msra.mxu0 %v513
    %v515 = vand.u32 %v67, 4294901760
    %v516 = vsub.f32 %v67, %v515
    %v517 = vand.u32 %v516, 4294901760
    %v518 = vsub.f32 %v516, %v517
    %v519 = vand.u32 %v518, 4294901760
    %520 = vmatpush.msra.mxu0 %v519
    %v521 = vand.u32 %v65, 4294901760
    %v522 = vsub.f32 %v65, %v521
    %v523 = vand.u32 %v522, 4294901760
    %v524 = vsub.f32 %v522, %v523
    %v525 = vand.u32 %v524, 4294901760
    %526 = vmatpush.msra.mxu0 %v525
    %v527 = vand.u32 %v63, 4294901760
    %v528 = vsub.f32 %v63, %v527
    %v529 = vand.u32 %v528, 4294901760
    %v530 = vsub.f32 %v528, %v529
    %v531 = vand.u32 %v530, 4294901760
    %532 = vmatpush.msra.mxu0 %v531
    %v533 = vand.u32 %v94, 4294901760
    %534 = vmatmul.f32.gmra.mxu0 %v533
    %v535 = vpop.f32.mrf.mxu0
    %v536 = vadd.f32 %v475, %v535
    %537 = vdwg.mxu0
    %538 = vmatpush.msra.mxu0 0.0
    %539 = vmatpush.msra.mxu0 0.0
    %540 = vmatpush.msra.mxu0 0.0
    %541 = vmatpush.msra.mxu0 0.0
    %542 = vmatpush.msra.mxu0 0.0
    %543 = vmatpush.msra.mxu0 0.0
    %544 = vmatpush.msra.mxu0 0.0
    %545 = vmatpush.msra.mxu0 0.0
    %v546 = vand.u32 %v98, 4294901760
    %v547 = vsub.f32 %v98, %v546
    %548 = vmatpush.msra.mxu0 %v547
    %v549 = vand.u32 %v75, 4294901760
    %v550 = vsub.f32 %v75, %v549
    %551 = vmatpush.msra.mxu0 %v550
    %v552 = vand.u32 %v73, 4294901760
    %v553 = vsub.f32 %v73, %v552
    %554 = vmatpush.msra.mxu0 %v553
    %v555 = vand.u32 %v71, 4294901760
    %v556 = vsub.f32 %v71, %v555
    %557 = vmatpush.msra.mxu0 %v556
    %v558 = vand.u32 %v69, 4294901760
    %v559 = vsub.f32 %v69, %v558
    %560 = vmatpush.msra.mxu0 %v559
    %v561 = vand.u32 %v67, 4294901760
    %v562 = vsub.f32 %v67, %v561
    %563 = vmatpush.msra.mxu0 %v562
    %v564 = vand.u32 %v65, 4294901760
    %v565 = vsub.f32 %v65, %v564
    %566 = vmatpush.msra.mxu0 %v565
    %v567 = vand.u32 %v63, 4294901760
    %v568 = vsub.f32 %v63, %v567
    %569 = vmatpush.msra.mxu0 %v568
    %v570 = vand.u32 %v94, 4294901760
    %v571 = vsub.f32 %v94, %v570
    %572 = vmatmul.f32.gmra.mxu0 %v571
    %v573 = vpop.f32.mrf.mxu0
    %v574 = vadd.f32 %v536, %v573
    %575 = vdwg.mxu0
    %576 = vmatpush.msra.mxu0 0.0
    %577 = vmatpush.msra.mxu0 0.0
    %578 = vmatpush.msra.mxu0 0.0
    %579 = vmatpush.msra.mxu0 0.0
    %580 = vmatpush.msra.mxu0 0.0
    %581 = vmatpush.msra.mxu0 0.0
    %582 = vmatpush.msra.mxu0 0.0
    %583 = vmatpush.msra.mxu0 0.0
    %v584 = vand.u32 %v98, 4294901760
    %585 = vmatpush.msra.mxu0 %v584
    %v586 = vand.u32 %v75, 4294901760
    %587 = vmatpush.msra.mxu0 %v586
    %v588 = vand.u32 %v73, 4294901760
    %589 = vmatpush.msra.mxu0 %v588
    %v590 = vand.u32 %v71, 4294901760
    %591 = vmatpush.msra.mxu0 %v590
    %v592 = vand.u32 %v69, 4294901760
    %593 = vmatpush.msra.mxu0 %v592
    %v594 = vand.u32 %v67, 4294901760
    %595 = vmatpush.msra.mxu0 %v594
    %v596 = vand.u32 %v65, 4294901760
    %597 = vmatpush.msra.mxu0 %v596
    %v598 = vand.u32 %v63, 4294901760
    %599 = vmatpush.msra.mxu0 %v598
    %v600 = vand.u32 %v94, 4294901760
    %v601 = vsub.f32 %v94, %v600
    %v602 = vand.u32 %v601, 4294901760
    %603 = vmatmul.f32.gmra.mxu0 %v602
    %v604 = vpop.f32.mrf.mxu0
    %v605 = vadd.f32 %v574, %v604
    %606 = vdwg.mxu0
    %607 = vmatpush.msra.mxu0 0.0
    %608 = vmatpush.msra.mxu0 0.0
    %609 = vmatpush.msra.mxu0 0.0
    %610 = vmatpush.msra.mxu0 0.0
    %611 = vmatpush.msra.mxu0 0.0
    %612 = vmatpush.msra.mxu0 0.0
    %613 = vmatpush.msra.mxu0 0.0
    %614 = vmatpush.msra.mxu0 0.0
    %v615 = vand.u32 %v98, 4294901760
    %v616 = vsub.f32 %v98, %v615
    %v617 = vand.u32 %v616, 4294901760
    %618 = vmatpush.msra.mxu0 %v617
    %v619 = vand.u32 %v75, 4294901760
    %v620 = vsub.f32 %v75, %v619
    %v621 = vand.u32 %v620, 4294901760
    %622 = vmatpush.msra.mxu0 %v621
    %v623 = vand.u32 %v73, 4294901760
    %v624 = vsub.f32 %v73, %v623
    %v625 = vand.u32 %v624, 4294901760
    %626 = vmatpush.msra.mxu0 %v625
    %v627 = vand.u32 %v71, 4294901760
    %v628 = vsub.f32 %v71, %v627
    %v629 = vand.u32 %v628, 4294901760
    %630 = vmatpush.msra.mxu0 %v629
    %v631 = vand.u32 %v69, 4294901760
    %v632 = vsub.f32 %v69, %v631
    %v633 = vand.u32 %v632, 4294901760
    %634 = vmatpush.msra.mxu0 %v633
    %v635 = vand.u32 %v67, 4294901760
    %v636 = vsub.f32 %v67, %v635
    %v637 = vand.u32 %v636, 4294901760
    %638 = vmatpush.msra.mxu0 %v637
    %v639 = vand.u32 %v65, 4294901760
    %v640 = vsub.f32 %v65, %v639
    %v641 = vand.u32 %v640, 4294901760
    %642 = vmatpush.msra.mxu0 %v641
    %v643 = vand.u32 %v63, 4294901760
    %v644 = vsub.f32 %v63, %v643
    %v645 = vand.u32 %v644, 4294901760
    %646 = vmatpush.msra.mxu0 %v645
    %v647 = vand.u32 %v94, 4294901760
    %648 = vmatmul.f32.gmra.mxu0 %v647
    %v649 = vpop.f32.mrf.mxu0
    %v650 = vadd.f32 %v605, %v649
    %651 = vdwg.mxu0
    %652 = vmatpush.msra.mxu0 0.0
    %653 = vmatpush.msra.mxu0 0.0
    %654 = vmatpush.msra.mxu0 0.0
    %655 = vmatpush.msra.mxu0 0.0
    %656 = vmatpush.msra.mxu0 0.0
    %657 = vmatpush.msra.mxu0 0.0
    %658 = vmatpush.msra.mxu0 0.0
    %659 = vmatpush.msra.mxu0 0.0
    %v660 = vand.u32 %v98, 4294901760
    %661 = vmatpush.msra.mxu0 %v660
    %v662 = vand.u32 %v75, 4294901760
    %663 = vmatpush.msra.mxu0 %v662
    %v664 = vand.u32 %v73, 4294901760
    %665 = vmatpush.msra.mxu0 %v664
    %v666 = vand.u32 %v71, 4294901760
    %667 = vmatpush.msra.mxu0 %v666
    %v668 = vand.u32 %v69, 4294901760
    %669 = vmatpush.msra.mxu0 %v668
    %v670 = vand.u32 %v67, 4294901760
    %671 = vmatpush.msra.mxu0 %v670
    %v672 = vand.u32 %v65, 4294901760
    %673 = vmatpush.msra.mxu0 %v672
    %v674 = vand.u32 %v63, 4294901760
    %675 = vmatpush.msra.mxu0 %v674
    %v676 = vand.u32 %v94, 4294901760
    %677 = vmatmul.f32.gmra.mxu0 %v676
    %v678 = vpop.f32.mrf.mxu0
    %v679 = vadd.f32 %v650, %v678
    %680 = vdwg.mxu0
    %v681 = vand.u32 %v62, 4294901760
    %682 = vmatpush.msra.mxu0 %v681
    %v683 = vand.u32 %v60, 4294901760
    %684 = vmatpush.msra.mxu0 %v683
    %v685 = vand.u32 %v58, 4294901760
    %686 = vmatpush.msra.mxu0 %v685
    %v687 = vand.u32 %v56, 4294901760
    %688 = vmatpush.msra.mxu0 %v687
    %v689 = vand.u32 %v54, 4294901760
    %690 = vmatpush.msra.mxu0 %v689
    %v691 = vand.u32 %v52, 4294901760
    %692 = vmatpush.msra.mxu0 %v691
    %v693 = vand.u32 %v50, 4294901760
    %694 = vmatpush.msra.mxu0 %v693
    %v695 = vand.u32 %v48, 4294901760
    %696 = vmatpush.msra.mxu0 %v695
    %v697 = vand.u32 %v46, 4294901760
    %698 = vmatpush.msra.mxu0 %v697
    %v699 = vand.u32 %v44, 4294901760
    %700 = vmatpush.msra.mxu0 %v699
    %v701 = vand.u32 %v42, 4294901760
    %702 = vmatpush.msra.mxu0 %v701
    %v703 = vand.u32 %v40, 4294901760
    %704 = vmatpush.msra.mxu0 %v703
    %v705 = vand.u32 %v38, 4294901760
    %706 = vmatpush.msra.mxu0 %v705
    %v707 = vand.u32 %v36, 4294901760
    %708 = vmatpush.msra.mxu0 %v707
    %v709 = vand.u32 %v34, 4294901760
    %710 = vmatpush.msra.mxu0 %v709
    %v711 = vand.u32 %v32, 4294901760
    %712 = vmatpush.msra.mxu0 %v711
    %v713 = vand.u32 %v90, 4294901760
    %v714 = vsub.f32 %v90, %v713
    %v715 = vand.u32 %v714, 4294901760
    %v716 = vsub.f32 %v714, %v715
    %v717 = vand.u32 %v716, 4294901760
    %718 = vmatmul.f32.gmra.mxu0 %v717
    %v719 = vpop.f32.mrf.mxu0
    %v720 = vadd.f32 0.0, %v719
    %721 = vdwg.mxu0
    %v722 = vand.u32 %v62, 4294901760
    %v723 = vsub.f32 %v62, %v722
    %v724 = vand.u32 %v723, 4294901760
    %v725 = vsub.f32 %v723, %v724
    %v726 = vand.u32 %v725, 4294901760
    %727 = vmatpush.msra.mxu0 %v726
    %v728 = vand.u32 %v60, 4294901760
    %v729 = vsub.f32 %v60, %v728
    %v730 = vand.u32 %v729, 4294901760
    %v731 = vsub.f32 %v729, %v730
    %v732 = vand.u32 %v731, 4294901760
    %733 = vmatpush.msra.mxu0 %v732
    %v734 = vand.u32 %v58, 4294901760
    %v735 = vsub.f32 %v58, %v734
    %v736 = vand.u32 %v735, 4294901760
    %v737 = vsub.f32 %v735, %v736
    %v738 = vand.u32 %v737, 4294901760
    %739 = vmatpush.msra.mxu0 %v738
    %v740 = vand.u32 %v56, 4294901760
    %v741 = vsub.f32 %v56, %v740
    %v742 = vand.u32 %v741, 4294901760
    %v743 = vsub.f32 %v741, %v742
    %v744 = vand.u32 %v743, 4294901760
    %745 = vmatpush.msra.mxu0 %v744
    %v746 = vand.u32 %v54, 4294901760
    %v747 = vsub.f32 %v54, %v746
    %v748 = vand.u32 %v747, 4294901760
    %v749 = vsub.f32 %v747, %v748
    %v750 = vand.u32 %v749, 4294901760
    %751 = vmatpush.msra.mxu0 %v750
    %v752 = vand.u32 %v52, 4294901760
    %v753 = vsub.f32 %v52, %v752
    %v754 = vand.u32 %v753, 4294901760
    %v755 = vsub.f32 %v753, %v754
    %v756 = vand.u32 %v755, 4294901760
    %757 = vmatpush.msra.mxu0 %v756
    %v758 = vand.u32 %v50, 4294901760
    %v759 = vsub.f32 %v50, %v758
    %v760 = vand.u32 %v759, 4294901760
    %v761 = vsub.f32 %v759, %v760
    %v762 = vand.u32 %v761, 4294901760
    %763 = vmatpush.msra.mxu0 %v762
    %v764 = vand.u32 %v48, 4294901760
    %v765 = vsub.f32 %v48, %v764
    %v766 = vand.u32 %v765, 4294901760
    %v767 = vsub.f32 %v765, %v766
    %v768 = vand.u32 %v767, 4294901760
    %769 = vmatpush.msra.mxu0 %v768
    %v770 = vand.u32 %v46, 4294901760
    %v771 = vsub.f32 %v46, %v770
    %v772 = vand.u32 %v771, 4294901760
    %v773 = vsub.f32 %v771, %v772
    %v774 = vand.u32 %v773, 4294901760
    %775 = vmatpush.msra.mxu0 %v774
    %v776 = vand.u32 %v44, 4294901760
    %v777 = vsub.f32 %v44, %v776
    %v778 = vand.u32 %v777, 4294901760
    %v779 = vsub.f32 %v777, %v778
    %v780 = vand.u32 %v779, 4294901760
    %781 = vmatpush.msra.mxu0 %v780
    %v782 = vand.u32 %v42, 4294901760
    %v783 = vsub.f32 %v42, %v782
    %v784 = vand.u32 %v783, 4294901760
    %v785 = vsub.f32 %v783, %v784
    %v786 = vand.u32 %v785, 4294901760
    %787 = vmatpush.msra.mxu0 %v786
    %v788 = vand.u32 %v40, 4294901760
    %v789 = vsub.f32 %v40, %v788
    %v790 = vand.u32 %v789, 4294901760
    %v791 = vsub.f32 %v789, %v790
    %v792 = vand.u32 %v791, 4294901760
    %793 = vmatpush.msra.mxu0 %v792
    %v794 = vand.u32 %v38, 4294901760
    %v795 = vsub.f32 %v38, %v794
    %v796 = vand.u32 %v795, 4294901760
    %v797 = vsub.f32 %v795, %v796
    %v798 = vand.u32 %v797, 4294901760
    %799 = vmatpush.msra.mxu0 %v798
    %v800 = vand.u32 %v36, 4294901760
    %v801 = vsub.f32 %v36, %v800
    %v802 = vand.u32 %v801, 4294901760
    %v803 = vsub.f32 %v801, %v802
    %v804 = vand.u32 %v803, 4294901760
    %805 = vmatpush.msra.mxu0 %v804
    %v806 = vand.u32 %v34, 4294901760
    %v807 = vsub.f32 %v34, %v806
    %v808 = vand.u32 %v807, 4294901760
    %v809 = vsub.f32 %v807, %v808
    %v810 = vand.u32 %v809, 4294901760
    %811 = vmatpush.msra.mxu0 %v810
    %v812 = vand.u32 %v32, 4294901760
    %v813 = vsub.f32 %v32, %v812
    %v814 = vand.u32 %v813, 4294901760
    %v815 = vsub.f32 %v813, %v814
    %v816 = vand.u32 %v815, 4294901760
    %817 = vmatpush.msra.mxu0 %v816
    %v818 = vand.u32 %v90, 4294901760
    %819 = vmatmul.f32.gmra.mxu0 %v818
    %v820 = vpop.f32.mrf.mxu0
    %v821 = vadd.f32 %v720, %v820
    %822 = vdwg.mxu0
    %v823 = vand.u32 %v62, 4294901760
    %v824 = vsub.f32 %v62, %v823
    %825 = vmatpush.msra.mxu0 %v824
    %v826 = vand.u32 %v60, 4294901760
    %v827 = vsub.f32 %v60, %v826
    %828 = vmatpush.msra.mxu0 %v827
    %v829 = vand.u32 %v58, 4294901760
    %v830 = vsub.f32 %v58, %v829
    %831 = vmatpush.msra.mxu0 %v830
    %v832 = vand.u32 %v56, 4294901760
    %v833 = vsub.f32 %v56, %v832
    %834 = vmatpush.msra.mxu0 %v833
    %v835 = vand.u32 %v54, 4294901760
    %v836 = vsub.f32 %v54, %v835
    %837 = vmatpush.msra.mxu0 %v836
    %v838 = vand.u32 %v52, 4294901760
    %v839 = vsub.f32 %v52, %v838
    %840 = vmatpush.msra.mxu0 %v839
    %v841 = vand.u32 %v50, 4294901760
    %v842 = vsub.f32 %v50, %v841
    %843 = vmatpush.msra.mxu0 %v842
    %v844 = vand.u32 %v48, 4294901760
    %v845 = vsub.f32 %v48, %v844
    %846 = vmatpush.msra.mxu0 %v845
    %v847 = vand.u32 %v46, 4294901760
    %v848 = vsub.f32 %v46, %v847
    %849 = vmatpush.msra.mxu0 %v848
    %v850 = vand.u32 %v44, 4294901760
    %v851 = vsub.f32 %v44, %v850
    %852 = vmatpush.msra.mxu0 %v851
    %v853 = vand.u32 %v42, 4294901760
    %v854 = vsub.f32 %v42, %v853
    %855 = vmatpush.msra.mxu0 %v854
    %v856 = vand.u32 %v40, 4294901760
    %v857 = vsub.f32 %v40, %v856
    %858 = vmatpush.msra.mxu0 %v857
    %v859 = vand.u32 %v38, 4294901760
    %v860 = vsub.f32 %v38, %v859
    %861 = vmatpush.msra.mxu0 %v860
    %v862 = vand.u32 %v36, 4294901760
    %v863 = vsub.f32 %v36, %v862
    %864 = vmatpush.msra.mxu0 %v863
    %v865 = vand.u32 %v34, 4294901760
    %v866 = vsub.f32 %v34, %v865
    %867 = vmatpush.msra.mxu0 %v866
    %v868 = vand.u32 %v32, 4294901760
    %v869 = vsub.f32 %v32, %v868
    %870 = vmatpush.msra.mxu0 %v869
    %v871 = vand.u32 %v90, 4294901760
    %v872 = vsub.f32 %v90, %v871
    %873 = vmatmul.f32.gmra.mxu0 %v872
    %v874 = vpop.f32.mrf.mxu0
    %v875 = vadd.f32 %v821, %v874
    %876 = vdwg.mxu0
    %v877 = vand.u32 %v62, 4294901760
    %878 = vmatpush.msra.mxu0 %v877
    %v879 = vand.u32 %v60, 4294901760
    %880 = vmatpush.msra.mxu0 %v879
    %v881 = vand.u32 %v58, 4294901760
    %882 = vmatpush.msra.mxu0 %v881
    %v883 = vand.u32 %v56, 4294901760
    %884 = vmatpush.msra.mxu0 %v883
    %v885 = vand.u32 %v54, 4294901760
    %886 = vmatpush.msra.mxu0 %v885
    %v887 = vand.u32 %v52, 4294901760
    %888 = vmatpush.msra.mxu0 %v887
    %v889 = vand.u32 %v50, 4294901760
    %890 = vmatpush.msra.mxu0 %v889
    %v891 = vand.u32 %v48, 4294901760
    %892 = vmatpush.msra.mxu0 %v891
    %v893 = vand.u32 %v46, 4294901760
    %894 = vmatpush.msra.mxu0 %v893
    %v895 = vand.u32 %v44, 4294901760
    %896 = vmatpush.msra.mxu0 %v895
    %v897 = vand.u32 %v42, 4294901760
    %898 = vmatpush.msra.mxu0 %v897
    %v899 = vand.u32 %v40, 4294901760
    %900 = vmatpush.msra.mxu0 %v899
    %v901 = vand.u32 %v38, 4294901760
    %902 = vmatpush.msra.mxu0 %v901
    %v903 = vand.u32 %v36, 4294901760
    %904 = vmatpush.msra.mxu0 %v903
    %v905 = vand.u32 %v34, 4294901760
    %906 = vmatpush.msra.mxu0 %v905
    %v907 = vand.u32 %v32, 4294901760
    %908 = vmatpush.msra.mxu0 %v907
    %v909 = vand.u32 %v90, 4294901760
    %v910 = vsub.f32 %v90, %v909
    %v911 = vand.u32 %v910, 4294901760
    %912 = vmatmul.f32.gmra.mxu0 %v911
    %v913 = vpop.f32.mrf.mxu0
    %v914 = vadd.f32 %v875, %v913
    %915 = vdwg.mxu0
    %v916 = vand.u32 %v62, 4294901760
    %v917 = vsub.f32 %v62, %v916
    %v918 = vand.u32 %v917, 4294901760
    %919 = vmatpush.msra.mxu0 %v918
    %v920 = vand.u32 %v60, 4294901760
    %v921 = vsub.f32 %v60, %v920
    %v922 = vand.u32 %v921, 4294901760
    %923 = vmatpush.msra.mxu0 %v922
    %v924 = vand.u32 %v58, 4294901760
    %v925 = vsub.f32 %v58, %v924
    %v926 = vand.u32 %v925, 4294901760
    %927 = vmatpush.msra.mxu0 %v926
    %v928 = vand.u32 %v56, 4294901760
    %v929 = vsub.f32 %v56, %v928
    %v930 = vand.u32 %v929, 4294901760
    %931 = vmatpush.msra.mxu0 %v930
    %v932 = vand.u32 %v54, 4294901760
    %v933 = vsub.f32 %v54, %v932
    %v934 = vand.u32 %v933, 4294901760
    %935 = vmatpush.msra.mxu0 %v934
    %v936 = vand.u32 %v52, 4294901760
    %v937 = vsub.f32 %v52, %v936
    %v938 = vand.u32 %v937, 4294901760
    %939 = vmatpush.msra.mxu0 %v938
    %v940 = vand.u32 %v50, 4294901760
    %v941 = vsub.f32 %v50, %v940
    %v942 = vand.u32 %v941, 4294901760
    %943 = vmatpush.msra.mxu0 %v942
    %v944 = vand.u32 %v48, 4294901760
    %v945 = vsub.f32 %v48, %v944
    %v946 = vand.u32 %v945, 4294901760
    %947 = vmatpush.msra.mxu0 %v946
    %v948 = vand.u32 %v46, 4294901760
    %v949 = vsub.f32 %v46, %v948
    %v950 = vand.u32 %v949, 4294901760
    %951 = vmatpush.msra.mxu0 %v950
    %v952 = vand.u32 %v44, 4294901760
    %v953 = vsub.f32 %v44, %v952
    %v954 = vand.u32 %v953, 4294901760
    %955 = vmatpush.msra.mxu0 %v954
    %v956 = vand.u32 %v42, 4294901760
    %v957 = vsub.f32 %v42, %v956
    %v958 = vand.u32 %v957, 4294901760
    %959 = vmatpush.msra.mxu0 %v958
    %v960 = vand.u32 %v40, 4294901760
    %v961 = vsub.f32 %v40, %v960
    %v962 = vand.u32 %v961, 4294901760
    %963 = vmatpush.msra.mxu0 %v962
    %v964 = vand.u32 %v38, 4294901760
    %v965 = vsub.f32 %v38, %v964
    %v966 = vand.u32 %v965, 4294901760
    %967 = vmatpush.msra.mxu0 %v966
    %v968 = vand.u32 %v36, 4294901760
    %v969 = vsub.f32 %v36, %v968
    %v970 = vand.u32 %v969, 4294901760
    %971 = vmatpush.msra.mxu0 %v970
    %v972 = vand.u32 %v34, 4294901760
    %v973 = vsub.f32 %v34, %v972
    %v974 = vand.u32 %v973, 4294901760
    %975 = vmatpush.msra.mxu0 %v974
    %v976 = vand.u32 %v32, 4294901760
    %v977 = vsub.f32 %v32, %v976
    %v978 = vand.u32 %v977, 4294901760
    %979 = vmatpush.msra.mxu0 %v978
    %v980 = vand.u32 %v90, 4294901760
    %981 = vmatmul.f32.gmra.mxu0 %v980
    %v982 = vpop.f32.mrf.mxu0
    %v983 = vadd.f32 %v914, %v982
    %984 = vdwg.mxu0
    %v985 = vand.u32 %v62, 4294901760
    %986 = vmatpush.msra.mxu0 %v985
    %v987 = vand.u32 %v60, 4294901760
    %988 = vmatpush.msra.mxu0 %v987
    %v989 = vand.u32 %v58, 4294901760
    %990 = vmatpush.msra.mxu0 %v989
    %v991 = vand.u32 %v56, 4294901760
    %992 = vmatpush.msra.mxu0 %v991
    %v993 = vand.u32 %v54, 4294901760
    %994 = vmatpush.msra.mxu0 %v993
    %v995 = vand.u32 %v52, 4294901760
    %996 = vmatpush.msra.mxu0 %v995
    %v997 = vand.u32 %v50, 4294901760
    %998 = vmatpush.msra.mxu0 %v997
    %v999 = vand.u32 %v48, 4294901760
    %1000 = vmatpush.msra.mxu0 %v999
    %v1001 = vand.u32 %v46, 4294901760
    %1002 = vmatpush.msra.mxu0 %v1001
    %v1003 = vand.u32 %v44, 4294901760
    %1004 = vmatpush.msra.mxu0 %v1003
    %v1005 = vand.u32 %v42, 4294901760
    %1006 = vmatpush.msra.mxu0 %v1005
    %v1007 = vand.u32 %v40, 4294901760
    %1008 = vmatpush.msra.mxu0 %v1007
    %v1009 = vand.u32 %v38, 4294901760
    %1010 = vmatpush.msra.mxu0 %v1009
    %v1011 = vand.u32 %v36, 4294901760
    %1012 = vmatpush.msra.mxu0 %v1011
    %v1013 = vand.u32 %v34, 4294901760
    %1014 = vmatpush.msra.mxu0 %v1013
    %v1015 = vand.u32 %v32, 4294901760
    %1016 = vmatpush.msra.mxu0 %v1015
    %v1017 = vand.u32 %v90, 4294901760
    %1018 = vmatmul.f32.gmra.mxu0 %v1017
    %v1019 = vpop.f32.mrf.mxu0
    %v1020 = vadd.f32 %v983, %v1019
    %1021 = vdwg.mxu0
    %1022 = vmatpush.msra.mxu0 0.0
    %1023 = vmatpush.msra.mxu0 0.0
    %1024 = vmatpush.msra.mxu0 0.0
    %1025 = vmatpush.msra.mxu0 0.0
    %1026 = vmatpush.msra.mxu0 0.0
    %1027 = vmatpush.msra.mxu0 0.0
    %1028 = vmatpush.msra.mxu0 0.0
    %1029 = vmatpush.msra.mxu0 0.0
    %v1030 = vand.u32 %v101, 4294901760
    %1031 = vmatpush.msra.mxu0 %v1030
    %v1032 = vand.u32 %v76, 4294901760
    %1033 = vmatpush.msra.mxu0 %v1032
    %v1034 = vand.u32 %v74, 4294901760
    %1035 = vmatpush.msra.mxu0 %v1034
    %v1036 = vand.u32 %v72, 4294901760
    %1037 = vmatpush.msra.mxu0 %v1036
    %v1038 = vand.u32 %v70, 4294901760
    %1039 = vmatpush.msra.mxu0 %v1038
    %v1040 = vand.u32 %v68, 4294901760
    %1041 = vmatpush.msra.mxu0 %v1040
    %v1042 = vand.u32 %v66, 4294901760
    %1043 = vmatpush.msra.mxu0 %v1042
    %v1044 = vand.u32 %v64, 4294901760
    %1045 = vmatpush.msra.mxu0 %v1044
    %v1046 = vand.u32 %v94, 4294901760
    %v1047 = vsub.f32 %v94, %v1046
    %v1048 = vand.u32 %v1047, 4294901760
    %v1049 = vsub.f32 %v1047, %v1048
    %v1050 = vand.u32 %v1049, 4294901760
    %1051 = vmatmul.f32.gmra.mxu0 %v1050
    %v1052 = vpop.f32.mrf.mxu0
    %v1053 = vadd.f32 %v1020, %v1052
    %1054 = vdwg.mxu0
    %1055 = vmatpush.msra.mxu0 0.0
    %1056 = vmatpush.msra.mxu0 0.0
    %1057 = vmatpush.msra.mxu0 0.0
    %1058 = vmatpush.msra.mxu0 0.0
    %1059 = vmatpush.msra.mxu0 0.0
    %1060 = vmatpush.msra.mxu0 0.0
    %1061 = vmatpush.msra.mxu0 0.0
    %1062 = vmatpush.msra.mxu0 0.0
    %v1063 = vand.u32 %v101, 4294901760
    %v1064 = vsub.f32 %v101, %v1063
    %v1065 = vand.u32 %v1064, 4294901760
    %v1066 = vsub.f32 %v1064, %v1065
    %v1067 = vand.u32 %v1066, 4294901760
    %1068 = vmatpush.msra.mxu0 %v1067
    %v1069 = vand.u32 %v76, 4294901760
    %v1070 = vsub.f32 %v76, %v1069
    %v1071 = vand.u32 %v1070, 4294901760
    %v1072 = vsub.f32 %v1070, %v1071
    %v1073 = vand.u32 %v1072, 4294901760
    %1074 = vmatpush.msra.mxu0 %v1073
    %v1075 = vand.u32 %v74, 4294901760
    %v1076 = vsub.f32 %v74, %v1075
    %v1077 = vand.u32 %v1076, 4294901760
    %v1078 = vsub.f32 %v1076, %v1077
    %v1079 = vand.u32 %v1078, 4294901760
    %1080 = vmatpush.msra.mxu0 %v1079
    %v1081 = vand.u32 %v72, 4294901760
    %v1082 = vsub.f32 %v72, %v1081
    %v1083 = vand.u32 %v1082, 4294901760
    %v1084 = vsub.f32 %v1082, %v1083
    %v1085 = vand.u32 %v1084, 4294901760
    %1086 = vmatpush.msra.mxu0 %v1085
    %v1087 = vand.u32 %v70, 4294901760
    %v1088 = vsub.f32 %v70, %v1087
    %v1089 = vand.u32 %v1088, 4294901760
    %v1090 = vsub.f32 %v1088, %v1089
    %v1091 = vand.u32 %v1090, 4294901760
    %1092 = vmatpush.msra.mxu0 %v1091
    %v1093 = vand.u32 %v68, 4294901760
    %v1094 = vsub.f32 %v68, %v1093
    %v1095 = vand.u32 %v1094, 4294901760
    %v1096 = vsub.f32 %v1094, %v1095
    %v1097 = vand.u32 %v1096, 4294901760
    %1098 = vmatpush.msra.mxu0 %v1097
    %v1099 = vand.u32 %v66, 4294901760
    %v1100 = vsub.f32 %v66, %v1099
    %v1101 = vand.u32 %v1100, 4294901760
    %v1102 = vsub.f32 %v1100, %v1101
    %v1103 = vand.u32 %v1102, 4294901760
    %1104 = vmatpush.msra.mxu0 %v1103
    %v1105 = vand.u32 %v64, 4294901760
    %v1106 = vsub.f32 %v64, %v1105
    %v1107 = vand.u32 %v1106, 4294901760
    %v1108 = vsub.f32 %v1106, %v1107
    %v1109 = vand.u32 %v1108, 4294901760
    %1110 = vmatpush.msra.mxu0 %v1109
    %v1111 = vand.u32 %v94, 4294901760
    %1112 = vmatmul.f32.gmra.mxu0 %v1111
    %v1113 = vpop.f32.mrf.mxu0
    %v1114 = vadd.f32 %v1053, %v1113
    %1115 = vdwg.mxu0
    %1116 = vmatpush.msra.mxu0 0.0
    %1117 = vmatpush.msra.mxu0 0.0
    %1118 = vmatpush.msra.mxu0 0.0
    %1119 = vmatpush.msra.mxu0 0.0
    %1120 = vmatpush.msra.mxu0 0.0
    %1121 = vmatpush.msra.mxu0 0.0
    %1122 = vmatpush.msra.mxu0 0.0
    %1123 = vmatpush.msra.mxu0 0.0
    %v1124 = vand.u32 %v101, 4294901760
    %v1125 = vsub.f32 %v101, %v1124
    %1126 = vmatpush.msra.mxu0 %v1125
    %v1127 = vand.u32 %v76, 4294901760
    %v1128 = vsub.f32 %v76, %v1127
    %1129 = vmatpush.msra.mxu0 %v1128
    %v1130 = vand.u32 %v74, 4294901760
    %v1131 = vsub.f32 %v74, %v1130
    %1132 = vmatpush.msra.mxu0 %v1131
    %v1133 = vand.u32 %v72, 4294901760
    %v1134 = vsub.f32 %v72, %v1133
    %1135 = vmatpush.msra.mxu0 %v1134
    %v1136 = vand.u32 %v70, 4294901760
    %v1137 = vsub.f32 %v70, %v1136
    %1138 = vmatpush.msra.mxu0 %v1137
    %v1139 = vand.u32 %v68, 4294901760
    %v1140 = vsub.f32 %v68, %v1139
    %1141 = vmatpush.msra.mxu0 %v1140
    %v1142 = vand.u32 %v66, 4294901760
    %v1143 = vsub.f32 %v66, %v1142
    %1144 = vmatpush.msra.mxu0 %v1143
    %v1145 = vand.u32 %v64, 4294901760
    %v1146 = vsub.f32 %v64, %v1145
    %1147 = vmatpush.msra.mxu0 %v1146
    %v1148 = vand.u32 %v94, 4294901760
    %v1149 = vsub.f32 %v94, %v1148
    %1150 = vmatmul.f32.gmra.mxu0 %v1149
    %v1151 = vpop.f32.mrf.mxu0
    %v1152 = vadd.f32 %v1114, %v1151
    %1153 = vdwg.mxu0
    %1154 = vmatpush.msra.mxu0 0.0
    %1155 = vmatpush.msra.mxu0 0.0
    %1156 = vmatpush.msra.mxu0 0.0
    %1157 = vmatpush.msra.mxu0 0.0
    %1158 = vmatpush.msra.mxu0 0.0
    %1159 = vmatpush.msra.mxu0 0.0
    %1160 = vmatpush.msra.mxu0 0.0
    %1161 = vmatpush.msra.mxu0 0.0
    %v1162 = vand.u32 %v101, 4294901760
    %1163 = vmatpush.msra.mxu0 %v1162
    %v1164 = vand.u32 %v76, 4294901760
    %1165 = vmatpush.msra.mxu0 %v1164
    %v1166 = vand.u32 %v74, 4294901760
    %1167 = vmatpush.msra.mxu0 %v1166
    %v1168 = vand.u32 %v72, 4294901760
    %1169 = vmatpush.msra.mxu0 %v1168
    %v1170 = vand.u32 %v70, 4294901760
    %1171 = vmatpush.msra.mxu0 %v1170
    %v1172 = vand.u32 %v68, 4294901760
    %1173 = vmatpush.msra.mxu0 %v1172
    %v1174 = vand.u32 %v66, 4294901760
    %1175 = vmatpush.msra.mxu0 %v1174
    %v1176 = vand.u32 %v64, 4294901760
    %1177 = vmatpush.msra.mxu0 %v1176
    %v1178 = vand.u32 %v94, 4294901760
    %v1179 = vsub.f32 %v94, %v1178
    %v1180 = vand.u32 %v1179, 4294901760
    %1181 = vmatmul.f32.gmra.mxu0 %v1180
    %v1182 = vpop.f32.mrf.mxu0
    %v1183 = vadd.f32 %v1152, %v1182
    %1184 = vdwg.mxu0
    %1185 = vmatpush.msra.mxu0 0.0
    %1186 = vmatpush.msra.mxu0 0.0
    %1187 = vmatpush.msra.mxu0 0.0
    %1188 = vmatpush.msra.mxu0 0.0
    %1189 = vmatpush.msra.mxu0 0.0
    %1190 = vmatpush.msra.mxu0 0.0
    %1191 = vmatpush.msra.mxu0 0.0
    %1192 = vmatpush.msra.mxu0 0.0
    %v1193 = vand.u32 %v101, 4294901760
    %v1194 = vsub.f32 %v101, %v1193
    %v1195 = vand.u32 %v1194, 4294901760
    %1196 = vmatpush.msra.mxu0 %v1195
    %v1197 = vand.u32 %v76, 4294901760
    %v1198 = vsub.f32 %v76, %v1197
    %v1199 = vand.u32 %v1198, 4294901760
    %1200 = vmatpush.msra.mxu0 %v1199
    %v1201 = vand.u32 %v74, 4294901760
    %v1202 = vsub.f32 %v74, %v1201
    %v1203 = vand.u32 %v1202, 4294901760
    %1204 = vmatpush.msra.mxu0 %v1203
    %v1205 = vand.u32 %v72, 4294901760
    %v1206 = vsub.f32 %v72, %v1205
    %v1207 = vand.u32 %v1206, 4294901760
    %1208 = vmatpush.msra.mxu0 %v1207
    %v1209 = vand.u32 %v70, 4294901760
    %v1210 = vsub.f32 %v70, %v1209
    %v1211 = vand.u32 %v1210, 4294901760
    %1212 = vmatpush.msra.mxu0 %v1211
    %v1213 = vand.u32 %v68, 4294901760
    %v1214 = vsub.f32 %v68, %v1213
    %v1215 = vand.u32 %v1214, 4294901760
    %1216 = vmatpush.msra.mxu0 %v1215
    %v1217 = vand.u32 %v66, 4294901760
    %v1218 = vsub.f32 %v66, %v1217
    %v1219 = vand.u32 %v1218, 4294901760
    %1220 = vmatpush.msra.mxu0 %v1219
    %v1221 = vand.u32 %v64, 4294901760
    %v1222 = vsub.f32 %v64, %v1221
    %v1223 = vand.u32 %v1222, 4294901760
    %1224 = vmatpush.msra.mxu0 %v1223
    %v1225 = vand.u32 %v94, 4294901760
    %1226 = vmatmul.f32.gmra.mxu0 %v1225
    %v1227 = vpop.f32.mrf.mxu0
    %v1228 = vadd.f32 %v1183, %v1227
    %1229 = vdwg.mxu0
    %1230 = vmatpush.msra.mxu0 0.0
    %1231 = vmatpush.msra.mxu0 0.0
    %1232 = vmatpush.msra.mxu0 0.0
    %1233 = vmatpush.msra.mxu0 0.0
    %1234 = vmatpush.msra.mxu0 0.0
    %1235 = vmatpush.msra.mxu0 0.0
    %1236 = vmatpush.msra.mxu0 0.0
    %1237 = vmatpush.msra.mxu0 0.0
    %v1238 = vand.u32 %v101, 4294901760
    %1239 = vmatpush.msra.mxu0 %v1238
    %v1240 = vand.u32 %v76, 4294901760
    %1241 = vmatpush.msra.mxu0 %v1240
    %v1242 = vand.u32 %v74, 4294901760
    %1243 = vmatpush.msra.mxu0 %v1242
    %v1244 = vand.u32 %v72, 4294901760
    %1245 = vmatpush.msra.mxu0 %v1244
    %v1246 = vand.u32 %v70, 4294901760
    %1247 = vmatpush.msra.mxu0 %v1246
    %v1248 = vand.u32 %v68, 4294901760
    %1249 = vmatpush.msra.mxu0 %v1248
    %v1250 = vand.u32 %v66, 4294901760
    %1251 = vmatpush.msra.mxu0 %v1250
    %v1252 = vand.u32 %v64, 4294901760
    %1253 = vmatpush.msra.mxu0 %v1252
    %v1254 = vand.u32 %v94, 4294901760
    %1255 = vmatmul.f32.gmra.mxu0 %v1254
    %v1256 = vpop.f32.mrf.mxu0
    %v1257 = vadd.f32 %v1228, %v1256
    %1258 = vdwg.mxu0
    %v1261 = vrot.slane %v1257, 6
    %vm1262 = vcmask 1041408
    %v1263 = vsel %vm1262, %v679, %v1261
    %vm1264 = vcmask 1043458
    %v1265 = vsel %vm1264, %v679, %v1261
    %v1266 = vrot.slane %v1265, 2
    %vm1267 = vcmask 1045508
    %v1268 = vsel %vm1267, %v679, %v1261
    %v1269 = vrot.slane %v1268, 4
    %vm1270 = vcmask 1045504
    %v1271 = vsel %vm1270, %v1261, %v679
    %v1272 = vrot.slane %v1271, 6
    %vm1277 = vcmask 494594
    %vm1278 = vmor %vm1277, %vm1262
    %1279 = vst.msk [vmem:[#allocation4] sm:$0xf] %vm1278, %v1263
    %1280 = vst.msk [vmem:[#allocation4 + $0x4] sm:$0xf] %vm1278, %v1266
    %1281 = vst.msk [vmem:[#allocation4 + $0x8] sm:$0xf] %vm1278, %v1269
    %1282 = vst.msk [vmem:[#allocation4 + $0xc] sm:$0xf] %vm1278, %v1272
    // Predicated region
    $region14: #{_forward_impl.1} parent=1 // pred_check
      _
    $region15: #{_forward_impl.1} parent=1 // pred_check_branch
      %1284 = sbr.rel (0) target = $region17
    $region16: #{_forward_impl.1} parent=1 // pred_region
      // Predicated region
      $region18: #{_forward_impl.1} parent=16 // pred_check
        _
      $region19: #{_forward_impl.1} parent=16 // pred_check_branch
        %1286 = sbr.rel (0) target = $region21
      $region20: #{_forward_impl.1} parent=16 // pred_region
        // Predicated region
        $region22: #{_forward_impl.1} parent=20 // pred_check
          _
        $region23: #{_forward_impl.1} parent=20 // pred_check_branch
          %1288 = sbr.rel target = $region25
        $region24: #{_forward_impl.1} parent=20 // pred_region
          // Predicated region
          $region37: #{_forward_impl.1} parent=24 // pred_check
            _
          $region38: #{_forward_impl.1} parent=24 // pred_check_branch
            %1304 = sbr.rel (0) target = $region40
          $region39: #{_forward_impl.1} parent=24 // pred_region
            %s1306 = ssub.s32 16, 1
            loop: start=0, step=1, limit=1
            $region41: #{_forward_impl.1} parent=39 // loop_pre_header
              _
            $region42: #{_forward_impl.1} parent=39 // loop_header
              %s1308 = sphi 0, %s1312
              %p1309 = scmp.ge.s32.totalorder %s1308, 1
              %s1313 = sphi [#allocation4], [#allocation4]
              %s1314 = sphi %s2, %s2
            $region43: #{_forward_impl.1} parent=39 // loop_header_branch
              %1311 = sbr.rel (%p1309) target = $region47
            $region44: #{_forward_impl.1} parent=39 // loop_body
              %v1315 = vld [vmem:[%s1313] sm:%s1306]
              %1316 = vst [vmem:[%s1314] sm:%s1306] %v1315
            $region45: #{_forward_impl.1} parent=39 // loop_footer
              %s1312 = sadd.s32 1, %s1308
            $region46: #{_forward_impl.1} parent=39 // loop_footer_branch
              %1307 = sbr.rel target = $region42
            $region47: #{_forward_impl.1} parent=39 // loop_exit
              _
          $region40: #{_forward_impl.1} parent=24 // pred_fallthru
            _
        $region25: #{_forward_impl.1} parent=20 // pred_fallthru
          _
        // Predicated region
        $region26: #{_forward_impl.1} parent=20 // pred_check
          _
        $region27: #{_forward_impl.1} parent=20 // pred_check_branch
          %1290 = sbr.rel (0) target = $region29
        $region28: #{_forward_impl.1} parent=20 // pred_region
          %s1292 = ssub.s32 16, 1
          loop: start=0, step=1, limit=1
          $region30: #{_forward_impl.1} parent=28 // loop_pre_header
            _
          $region31: #{_forward_impl.1} parent=28 // loop_header
            %s1294 = sphi 0, %s1298
            %p1295 = scmp.ge.s32.totalorder %s1294, 1
            %s1299 = sphi [#allocation4], [#allocation4]
            %s1300 = sphi %s2, %s2
          $region32: #{_forward_impl.1} parent=28 // loop_header_branch
            %1297 = sbr.rel (%p1295) target = $region36
          $region33: #{_forward_impl.1} parent=28 // loop_body
            %v1301 = vld [vmem:[%s1299] sm:%s1292]
            %1302 = vst [vmem:[%s1300] sm:%s1292] %v1301
          $region34: #{_forward_impl.1} parent=28 // loop_footer
            %s1298 = sadd.s32 1, %s1294
          $region35: #{_forward_impl.1} parent=28 // loop_footer_branch
            %1293 = sbr.rel target = $region31
          $region36: #{_forward_impl.1} parent=28 // loop_exit
            _
        $region29: #{_forward_impl.1} parent=20 // pred_fallthru
          _
      $region21: #{_forward_impl.1} parent=16 // pred_fallthru
        _
      %1317 = vnop
    $region17: #{_forward_impl.1} parent=1 // pred_fallthru
      _
    // Predicated region
    $region48: #{_forward_impl.1} parent=1 // pred_check
      _
    $region49: #{_forward_impl.1} parent=1 // pred_check_branch
      %1319 = sbr.rel (0) target = $region51
    $region50: #{_forward_impl.1} parent=1 // pred_region
      _
    $region51: #{_forward_impl.1} parent=1 // pred_fallthru
      _
    %1320 = vsyncpa [#allocation3], 1

</llo_original>
